<compile_context>
chip_gen: v5e
topology: v5e:2x2
jax: 0.10.0
libtpu: 0.0.40
codegen_flags: <defaults>
</compile_context>

<pallas_src>
import math

import jax
import jax.numpy as jnp
from jax import lax
from jax.experimental import pallas as pl
from jax.experimental.pallas import tpu as pltpu


# ---------------------------------------------------------------------------
# Helpers
# ---------------------------------------------------------------------------

def _vmem_limit(request_bytes):
    """Generation-aware scoped-VMEM limit: <=75% of physical, >= default floor."""
    cap = 64 << 20
    try:  # trace-time hardware query; fall back to the smallest (v7x) budget
        cap = int(pltpu.get_tpu_info().vmem_capacity_bytes)
    except Exception:
        pass
    ceiling = (cap * 3) // 4            # headroom for compiler scratch / spills
    return int(min(max(int(request_bytes), 16 << 20), ceiling))


def _row_tile(dim, target):
    """Row (sublane) tile: full dim if small, else a multiple-of-8 <= target."""
    if dim <= target:
        return dim
    return max(8, (target // 8) * 8)


def _q_tile(seq, sink, target=128):
    """Query tile: multiple of 8 that also divides the sink offset so every Q
    block starts exactly at row `sink` of the fused sequence (no relayout)."""
    tq = min(seq, target)
    tq = max(8, (tq // 8) * 8)
    while sink % tq:
        tq //= 2
    return tq


def _kv_tile(total, target=256):
    """KV tile: full T if small, else a multiple-of-8 divisor of T (exact
    coverage -> no garbage keys enter the softmax)."""
    if total <= target:
        return total
    tk = (target // 8) * 8
    while total % tk:
        tk -= 8
    return max(tk, 8)


# ---------------------------------------------------------------------------
# QKV projection kernel: writes a head-major (B, 3H, T, Hd) layout directly
# ---------------------------------------------------------------------------

def _qkv_proj_kernel(x_ref, w_ref, b_ref, o_ref):
    # (tm, E) @ (E, Hd) on the MXU in bf16, f32 accumulation, f32 bias add.
    acc = jnp.dot(x_ref[0], w_ref[0], preferred_element_type=jnp.float32)
    o_ref[0, 0] = (acc + b_ref[0]).astype(o_ref.dtype)


def pallas_qkv_proj(xs, w_qkv, b_qkv, *, tm_target=256):
    """xs (B,T,E) bf16, w_qkv (3H,E,Hd) bf16, b_qkv (3H,1,Hd) f32 -> (B,3H,T,Hd) bf16."""
    B, T, E = xs.shape
    CH, _, Hd = w_qkv.shape
    tm = _row_tile(T, tm_target)
    n_t = pl.cdiv(T, tm)

    vmem = _vmem_limit(2 * 2 * (tm * E + E * Hd + tm * Hd) + 2 * 4 * Hd + (2 << 20))

    return pl.pallas_call(
        _qkv_proj_kernel,
        out_shape=jax.ShapeDtypeStruct((B, CH, T, Hd), xs.dtype),
        # channel axis outermost: each (E, Hd) weight tile is DMA'd once and
        # stays resident (revisited) across the whole (b, t) sweep.
        grid=(CH, B, n_t),
        in_specs=[
            pl.BlockSpec((1, tm, E), lambda c, b, t: (b, t, 0)),
            pl.BlockSpec((1, E, Hd), lambda c, b, t: (c, 0, 0)),
            pl.BlockSpec((1, 1, Hd), lambda c, b, t: (c, 0, 0)),
        ],
        out_specs=pl.BlockSpec((1, 1, tm, Hd), lambda c, b, t: (b, c, t, 0)),
        compiler_params=pltpu.CompilerParams(
            dimension_semantics=("parallel", "parallel", "parallel"),
            vmem_limit_bytes=vmem,
        ),
    )(xs, w_qkv, b_qkv)


# ---------------------------------------------------------------------------
# Flash-style sink attention with fused output projection
#   grid = (B, Q-tiles, H, KV-tiles); H and KV are sequential ("arbitrary")
#   reduction axes over the shared (tq, E) output-projection accumulator.
# ---------------------------------------------------------------------------

def _flash_attn_kernel(q_ref, k_ref, v_ref, wo_ref, bo_ref, o_ref,
                       m_ref, l_ref, ctx_ref, acc_ref):
    h = pl.program_id(2)
    kv = pl.program_id(3)
    last_h = pl.num_programs(2) - 1
    last_kv = pl.num_programs(3) - 1

    @pl.when((h == 0) & (kv == 0))
    def _init_output_acc():
        acc_ref[...] = jnp.zeros_like(acc_ref)

    @pl.when(kv == 0)
    def _init_head_state():
        m_ref[...] = jnp.full_like(m_ref, -jnp.inf)
        l_ref[...] = jnp.zeros_like(l_ref)
        ctx_ref[...] = jnp.zeros_like(ctx_ref)

    q = q_ref[0, 0]                      # (tq, Hd) bf16 (softmax scale pre-folded)
    k = k_ref[0, 0]                      # (tk, Hd) bf16
    v = v_ref[0, 0]                      # (tk, Hd) bf16

    # scores (tq, tk): contract head_dim directly, bf16 MXU, f32 accumulation
    s = lax.dot_general(q, k, (((1,), (1,)), ((), ())),
                        preferred_element_type=jnp.float32)

    m_prev = m_ref[...]
    m_new = jnp.maximum(m_prev, jnp.max(s, axis=-1, keepdims=True))
    p = jnp.exp(s - m_new)                                  # f32 probs
    alpha = jnp.exp(m_prev - m_new)                         # rescale factor
    l_ref[...] = alpha * l_ref[...] + jnp.sum(p, axis=-1, keepdims=True)
    ctx_ref[...] = alpha * ctx_ref[...] + jnp.dot(
        p.astype(v.dtype), v, preferred_element_type=jnp.float32)
    m_ref[...] = m_new

    @pl.when(kv == last_kv)
    def _fold_head_into_output():
        ctx = ctx_ref[...] * pl.reciprocal(l_ref[...], approx=True)
        acc_ref[...] += jnp.dot(ctx.astype(q_ref.dtype), wo_ref[0],
                                preferred_element_type=jnp.float32)

    @pl.when((h == last_h) & (kv == last_kv))
    def _store():
        o_ref[0] = (acc_ref[...] + bo_ref[...]).astype(o_ref.dtype)


def pallas_flash_attention(qkv, wo, bo, *, num_heads, num_sink):
    """qkv (B,3H,T,Hd) bf16 head-major, wo (H,Hd,E) bf16, bo (1,E) f32 -> (B,S,E) f32."""
    B, CH, T, Hd = qkv.shape
    H = num_heads
    E = H * Hd
    S = T - num_sink

    # sublane alignment of the sink offset (see perf review); pad sinks otherwise
    assert num_sink % 8 == 0 or num_sink == 0, "num_sink_tokens must be a multiple of 8"

    tq = _q_tile(S, num_sink)
    tk = _kv_tile(T)
    assert T % tk == 0
    n_q = pl.cdiv(S, tq)
    n_kv = T // tk
    sink_blk = num_sink // tq

    def q_map(b, qi, h, kv):
        return (b, h, sink_blk + qi, 0)          # q head h, rows from num_sink on

    def k_map(b, qi, h, kv):
        return (b, H + h, kv, 0)                  # k head h

    def v_map(b, qi, h, kv):
        return (b, 2 * H + h, kv, 0)              # v head h

    def wo_map(b, qi, h, kv):
        return (h, 0, 0)

    def bo_map(b, qi, h, kv):
        return (0, 0)

    def o_map(b, qi, h, kv):
        return (b, qi, 0)                         # revisited across (h, kv)

    vmem = _vmem_limit(
        2 * 2 * (tq * Hd + 2 * tk * Hd + Hd * E)      # bf16 inputs, double-buffered
        + 2 * 4 * (E + tq * E)                        # bias + f32 output, double-buffered
        + 4 * (tq * E + tq * Hd + 2 * tq)             # f32 scratch
        + (2 << 20))

    return pl.pallas_call(
        _flash_attn_kernel,
        out_shape=jax.ShapeDtypeStruct((B, S, E), jnp.float32),
        grid=(B, n_q, H, n_kv),
        in_specs=[
            pl.BlockSpec((1, 1, tq, Hd), q_map),
            pl.BlockSpec((1, 1, tk, Hd), k_map),
            pl.BlockSpec((1, 1, tk, Hd), v_map),
            pl.BlockSpec((1, Hd, E), wo_map),
            pl.BlockSpec((1, E), bo_map),
        ],
        out_specs=pl.BlockSpec((1, tq, E), o_map),
        scratch_shapes=[
            pltpu.VMEM((tq, 1), jnp.float32),    # running max m
            pltpu.VMEM((tq, 1), jnp.float32),    # running denom l
            pltpu.VMEM((tq, Hd), jnp.float32),   # per-head context numerator
            pltpu.VMEM((tq, E), jnp.float32),    # fused output-projection accumulator
        ],
        compiler_params=pltpu.CompilerParams(
            dimension_semantics=("parallel", "parallel", "arbitrary", "arbitrary"),
            vmem_limit_bytes=vmem,
        ),
    )(qkv, qkv, qkv, wo, bo)


# ---------------------------------------------------------------------------
# Parameters: raw (PyTorch-like) init + one-time fusion for the kernels
# ---------------------------------------------------------------------------

def init_params(key, embedding_dim, num_heads, num_sink_tokens):
    ks = jax.random.split(key, 9)
    E = embedding_dim
    scale = 1.0 / math.sqrt(E)
    return {
        # weights stored as (in, out) == PyTorch weight.T
        "wq": jax.random.uniform(ks[0], (E, E), jnp.float32, -scale, scale),
        "bq": jax.random.uniform(ks[1], (E,), jnp.float32, -scale, scale),
        "wk": jax.random.uniform(ks[2], (E, E), jnp.float32, -scale, scale),
        "bk": jax.random.uniform(ks[3], (E,), jnp.float32, -scale, scale),
        "wv": jax.random.uniform(ks[4], (E, E), jnp.float32, -scale, scale),
        "bv": jax.random.uniform(ks[5], (E,), jnp.float32, -scale, scale),
        "wo": jax.random.uniform(ks[6], (E, E), jnp.float32, -scale, scale),
        "bo": jax.random.uniform(ks[7], (E,), jnp.float32, -scale, scale),
        "sink_tokens": jax.random.normal(ks[8], (1, num_sink_tokens, E), jnp.float32),
    }


def fuse_params(params, num_heads):
    """One-time (outside the forward) weight fusion / layout / dtype prep."""
    E = params["wq"].shape[0]
    H = num_heads
    Hd = E // H
    scale = 1.0 / math.sqrt(Hd)

    # fold the softmax scale into the q projection (weights AND bias)
    w_qkv = jnp.concatenate(
        [params["wq"] * scale, params["wk"], params["wv"]], axis=1)        # (E, 3E)
    b_qkv = jnp.concatenate(
        [params["bq"] * scale, params["bk"], params["bv"]], axis=0)        # (3E,)

    # head-major channel layout: c<H -> q head c, H<=c<2H -> k, 2H<=c -> v
    w_qkv = w_qkv.reshape(E, 3 * H, Hd).transpose(1, 0, 2)                 # (3H, E, Hd)
    b_qkv = b_qkv.reshape(3 * H, 1, Hd)

    return {
        "num_heads": H,
        "w_qkv": w_qkv.astype(jnp.bfloat16),
        "b_qkv": b_qkv.astype(jnp.float32),
        "wo": params["wo"].reshape(H, Hd, E).astype(jnp.bfloat16),         # per-head
        "bo": params["bo"].reshape(1, E).astype(jnp.float32),
        "sink": params["sink_tokens"].astype(jnp.bfloat16),
    }


# ---------------------------------------------------------------------------
# Module-level forward (glue in plain JAX, hot path in Pallas)
# ---------------------------------------------------------------------------

def attention_with_sink_forward(fused, x, mask=None):
    # TODO(synk): optional additive `mask` path not implemented (mask=None only).
    assert mask is None
    B, S, E = x.shape
    H = fused["num_heads"]
    Ns = fused["sink"].shape[1]

    # prepend sink tokens (single bf16 concat; fused QKV weights are prebuilt)
    sink = jnp.broadcast_to(fused["sink"], (B, Ns, E))
    xs = jnp.concatenate([sink, x.astype(jnp.bfloat16)], axis=1)           # (B, T, E)

    # fused QKV projection straight into head-major (B, 3H, T, Hd)
    qkv = pallas_qkv_proj(xs, fused["w_qkv"], fused["b_qkv"])

    # flash attention over sinks+context, sink queries dropped, output
    # projection fused into the finalize -> (B, S, E) f32
    return pallas_flash_attention(qkv, fused["wo"], fused["bo"],
                                  num_heads=H, num_sink=Ns)


# ---------------------------------------------------------------------------
# Pure-JAX f32 reference (mirrors the PyTorch forward) for verification
# ---------------------------------------------------------------------------

def reference_forward(params, x, num_heads):
    B, S, E = x.shape
    Ns = params["sink_tokens"].shape[1]
    H = num_heads
    Hd = E // H
    T = Ns + S

    sink = jnp.broadcast_to(params["sink_tokens"], (B, Ns, E))
    xs = jnp.concatenate([sink, x], axis=1)

    def lin(t, w, b):
        return t @ w + b

    def to_heads(t):
        return t.reshape(B, T, H, Hd).transpose(0, 2, 1, 3)

    q = to_heads(lin(xs, params["wq"], params["bq"]))
    k = to_heads(lin(xs, params["wk"], params["bk"]))
    v = to_heads(lin(xs, params["wv"], params["bv"]))

    scores = jnp.einsum("bhqd,bhkd->bhqk", q, k) / math.sqrt(Hd)
    w = jax.nn.softmax(scores, axis=-1)
    attn = jnp.einsum("bhqk,bhkd->bhqd", w, v)
    attn = attn[:, :, Ns:]
    merged = attn.transpose(0, 2, 1, 3).reshape(B, S, E)
    return merged @ params["wo"] + params["bo"]


# ---------------------------------------------------------------------------

if __name__ == "__main__":
    B, S, E, H, NS = 2, 8, 32, 4, 8   # batch, seq, embed, heads, sink tokens

    key = jax.random.PRNGKey(0)
    k_param, k_x = jax.random.split(key)
    params = init_params(k_param, E, H, NS)
    fused = fuse_params(params, H)            # one-time fusion, outside the hot path
    x = jax.random.normal(k_x, (B, S, E), jnp.float32)

    out = attention_with_sink_forward(fused, x)
    out = jax.block_until_ready(out)

    ref = reference_forward(params, x, H)
    assert out.shape == (B, S, E)
    # tolerance reflects bf16 MXU operands (f32 accumulation) + approx reciprocal
    err = float(jnp.max(jnp.abs(out - ref)))
    assert jnp.allclose(out, ref, atol=5e-2, rtol=5e-2), f"mismatch vs reference (max abs err {err})"

    print("KERNEL_OK")
</pallas_src>

<mosaic_0001>
module attributes {stable_mosaic.version = 11 : i64} {
  func.func @_qkv_proj_kernel(%arg0: i32, %arg1: i32, %arg2: i32, %arg3: memref<1x16x32xbf16, #tpu.memory_space<vmem>>, %arg4: memref<1x32x8xbf16, #tpu.memory_space<vmem>>, %arg5: memref<1x1x8xf32, #tpu.memory_space<vmem>>, %arg6: memref<1x1x16x8xbf16, #tpu.memory_space<vmem>>) attributes {dimension_semantics = [#tpu.dimension_semantics<parallel>, #tpu.dimension_semantics<parallel>, #tpu.dimension_semantics<parallel>], iteration_bounds = array<i64: 12, 2, 1>, scalar_prefetch = 0 : i64, scratch_operands = 0 : i64, tpu.core_type = #tpu.core_type<tc>, window_params = [{transform_indices = @transform_0, window_bounds = array<i64: 1, 16, 32>}, {transform_indices = @transform_1, window_bounds = array<i64: 1, 32, 8>}, {transform_indices = @transform_2, window_bounds = array<i64: 1, 1, 8>}, {transform_indices = @transform_3, window_bounds = array<i64: 1, 1, 16, 8>}]} {
    %c0 = arith.constant 0 : index
    %c0_0 = arith.constant 0 : index
    %c0_1 = arith.constant 0 : index
    %0 = vector.load %arg3[%c0, %c0_0, %c0_1] : memref<1x16x32xbf16, #tpu.memory_space<vmem>>, vector<1x16x32xbf16>
    %1 = vector.shape_cast %0 : vector<1x16x32xbf16> to vector<16x32xbf16>
    %c0_2 = arith.constant 0 : index
    %c0_3 = arith.constant 0 : index
    %c0_4 = arith.constant 0 : index
    %2 = vector.load %arg4[%c0_2, %c0_3, %c0_4] : memref<1x32x8xbf16, #tpu.memory_space<vmem>>, vector<1x32x8xbf16>
    %3 = vector.shape_cast %2 : vector<1x32x8xbf16> to vector<32x8xbf16>
    %cst = arith.constant dense<0.000000e+00> : vector<16x8xf32>
    %4 = tpu.matmul %1, %3, %cst {dimension_numbers = #tpu.dot_dimension_numbers<[1], [0], [0], [1], [0, 0, 1, 1], [], []>} : vector<16x32xbf16>, vector<32x8xbf16>, vector<16x8xf32> -> vector<16x8xf32>
    %c0_5 = arith.constant 0 : index
    %c0_6 = arith.constant 0 : index
    %c0_7 = arith.constant 0 : index
    %5 = vector.load %arg5[%c0_5, %c0_6, %c0_7] : memref<1x1x8xf32, #tpu.memory_space<vmem>>, vector<1x1x8xf32>
    %6 = vector.shape_cast %5 : vector<1x1x8xf32> to vector<1x8xf32>
    %7 = vector.broadcast %6 : vector<1x8xf32> to vector<16x8xf32>
    %8 = arith.addf %4, %7 : vector<16x8xf32>
    %9 = arith.truncf %8 : vector<16x8xf32> to vector<16x8xbf16>
    %c0_8 = arith.constant 0 : index
    %c0_9 = arith.constant 0 : index
    %c0_10 = arith.constant 0 : index
    %c0_11 = arith.constant 0 : index
    %10 = vector.load %arg6[%c0_8, %c0_9, %c0_10, %c0_11] : memref<1x1x16x8xbf16, #tpu.memory_space<vmem>>, vector<1x1x16x8xbf16>
    %11 = vector.shape_cast %10 : vector<1x1x16x8xbf16> to vector<16x8xbf16>
    %12 = vector.shape_cast %9 : vector<16x8xbf16> to vector<1x1x16x8xbf16>
    tpu.vector_store %arg6[%c0_8, %c0_9, %c0_10, %c0_11], %12 {strides = array<i32>} : memref<1x1x16x8xbf16, #tpu.memory_space<vmem>>, vector<1x1x16x8xbf16>,
    return
  }
  func.func @transform_0(%arg0: i32, %arg1: i32, %arg2: i32) -> (i32, i32, i32) {
    %c0_i32 = arith.constant 0 : i32
    %c0_i32_0 = arith.constant 0 : i32
    return %arg1, %arg2, %c0_i32 : i32, i32, i32
  }
  func.func @transform_1(%arg0: i32, %arg1: i32, %arg2: i32) -> (i32, i32, i32) {
    %c0_i32 = arith.constant 0 : i32
    %c0_i32_0 = arith.constant 0 : i32
    %c0_i32_1 = arith.constant 0 : i32
    return %arg0, %c0_i32, %c0_i32_0 : i32, i32, i32
  }
  func.func @transform_2(%arg0: i32, %arg1: i32, %arg2: i32) -> (i32, i32, i32) {
    %c0_i32 = arith.constant 0 : i32
    %c0_i32_0 = arith.constant 0 : i32
    %c0_i32_1 = arith.constant 0 : i32
    return %arg0, %c0_i32, %c0_i32_0 : i32, i32, i32
  }
  func.func @transform_3(%arg0: i32, %arg1: i32, %arg2: i32) -> (i32, i32, i32, i32) {
    %c0_i32 = arith.constant 0 : i32
    %c0_i32_0 = arith.constant 0 : i32
    return %arg1, %arg0, %arg2, %c0_i32 : i32, i32, i32, i32
  }
}

</mosaic_0001>

<llo_original>
// kernel: tpu_custom_call.1
$region0: #{tpu_custom_call.1}
  #allocation0 [shape = 'u32[]', space=smem, size = 0x4, offset = 0x4, fixed_abs, tag = 'smem constant byte address 0x4 - core index']
  #allocation1 [shape = 'u32[72,128]{1,0:T(1,128)}', space=vmem, size = 0x9000, scoped, tag = 'internal scratch']
  %s0 = inlined_call_operand.vmem [shape: bf16[2,16,32], index: 0, kind: input, shape index: {}]
  %s1 = inlined_call_operand.vmem [shape: bf16[12,32,8], index: 1, kind: input, shape index: {}]
  %s2 = inlined_call_operand.vmem [shape: f32[12,1,8], index: 2, kind: input, shape index: {}]
  %s3 = inlined_call_operand.vmem [shape: bf16[2,12,16,8], index: 3, kind: output, shape index: {}]
  %s4 = sld [smem:[#allocation0]]
  $region45: #{tpu_custom_call.1} parent=0
    _
  %s6 = ssub.s32 1, %s4
  %s7 = scalar_select 0, %s6, %s4
  loop: start=0, step=1, limit=26
  $region2: #{tpu_custom_call.1} parent=0 // loop_pre_header
    _
  $region3: #{tpu_custom_call.1} parent=0 // loop_header
    %s9 = sphi 0, %s13
    %p10 = scmp.ge.s32.totalorder %s9, 26
    %s16 = sphi 0, %s35
    %s17 = sphi 0, %s31
    %s18 = sphi 0, %s27
    %s19 = sphi 0, %s16
    %s20 = sphi 0, %s17
    %s21 = sphi 0, %s18
    %s22 = sphi 0, %s19
    %s23 = sphi 0, %s20
    %s24 = sphi 0, %s21
    %s40 = sphi 0, %s42
    %s43 = sphi 0, %s40
    %s44 = sphi 0, %s43
    %s60 = sphi 0, %s44
    %s66 = sphi 0, %s68
    %s69 = sphi 0, %s66
    %s70 = sphi 0, %s69
    %s86 = sphi 0, %s70
    %s92 = sphi 0, %s94
    %s95 = sphi 0, %s92
    %s96 = sphi 0, %s95
    %s112 = sphi 0, %s96
    %s122 = sphi 0, %s124
    %s125 = sphi 0, %s122
    %s126 = sphi 0, %s125
    %s142 = sphi 0, %s126
  $region4: #{tpu_custom_call.1} parent=0 // loop_header_branch
    %12 = sbr.rel (%p10) target = $region8
  $region5: #{tpu_custom_call.1} parent=0 // loop_body
    %s14 = ssub.s32 %s9, 1
    %s15 = ssub.s32 %s9, 2
    %s25 = sadd.s32 1, %s18
    %p26 = scmp.ge.s32.totalorder %s25, 1
    %s27 = scalar_select %p26, 0, %s25
    %s28 = sadd.s32 1, %s17
    %s29 = scalar_select %p26, %s28, %s17
    %p30 = scmp.ge.s32.totalorder %s29, 2
    %s31 = scalar_select %p30, 0, %s29
    %s32 = sadd.s32 1, %s16
    %s33 = scalar_select %p30, %s32, %s16
    %p34 = scmp.ge.s32.totalorder %s33, 12
    %s35 = scalar_select %p34, 0, %s33
    %s36 = ssub.s32 %s17, %s31
    %s37 = ssub.s32 %s18, %s27
    %s38 = sor.u32 %s36, %s37
    %p39 = scmp.eq.s32.totalorder %s38, 0
    %s41 = sadd.s32 %s40, 1
    %s42 = scalar_select %p39, %s40, %s41
    %p45 = pneg %p39
    %p46 = scmp.eq.s32.totalorder %s9, 23
    %p47 = por %p45, %p46
    %p48 = scmp.ne.s32.totalorder %s40, %s43
    %p49 = scmp.eq.s32.totalorder %s9, 0
    %p50 = por %p48, %p49
    %p51 = scmp.ne.s32.totalorder %s40, %s43
    %p52 = scmp.eq.s32.totalorder %s14, 23
    %p53 = por %p51, %p52
    %p54 = scmp.ne.s32.totalorder %s43, %s44
    %p55 = scmp.eq.s32.totalorder %s14, 0
    %p56 = por %p54, %p55
    %p57 = scmp.ne.s32.totalorder %s43, %s44
    %p58 = scmp.eq.s32.totalorder %s15, 23
    %p59 = por %p57, %p58
    %p61 = scmp.ne.s32.totalorder %s44, %s60
    %p62 = scmp.eq.s32.totalorder %s15, 0
    %p63 = por %p61, %p62
    %s64 = ssub.s32 %s16, %s35
    %p65 = scmp.eq.s32.totalorder %s64, 0
    %s67 = sadd.s32 %s66, 1
    %s68 = scalar_select %p65, %s66, %s67
    %p71 = pneg %p65
    %p72 = scmp.eq.s32.totalorder %s9, 23
    %p73 = por %p71, %p72
    %p74 = scmp.ne.s32.totalorder %s66, %s69
    %p75 = scmp.eq.s32.totalorder %s9, 0
    %p76 = por %p74, %p75
    %p77 = scmp.ne.s32.totalorder %s66, %s69
    %p78 = scmp.eq.s32.totalorder %s14, 23
    %p79 = por %p77, %p78
    %p80 = scmp.ne.s32.totalorder %s69, %s70
    %p81 = scmp.eq.s32.totalorder %s14, 0
    %p82 = por %p80, %p81
    %p83 = scmp.ne.s32.totalorder %s69, %s70
    %p84 = scmp.eq.s32.totalorder %s15, 23
    %p85 = por %p83, %p84
    %p87 = scmp.ne.s32.totalorder %s70, %s86
    %p88 = scmp.eq.s32.totalorder %s15, 0
    %p89 = por %p87, %p88
    %s90 = ssub.s32 %s16, %s35
    %p91 = scmp.eq.s32.totalorder %s90, 0
    %s93 = sadd.s32 %s92, 1
    %s94 = scalar_select %p91, %s92, %s93
    %p97 = pneg %p91
    %p98 = scmp.eq.s32.totalorder %s9, 23
    %p99 = por %p97, %p98
    %p100 = scmp.ne.s32.totalorder %s92, %s95
    %p101 = scmp.eq.s32.totalorder %s9, 0
    %p102 = por %p100, %p101
    %p103 = scmp.ne.s32.totalorder %s92, %s95
    %p104 = scmp.eq.s32.totalorder %s14, 23
    %p105 = por %p103, %p104
    %p106 = scmp.ne.s32.totalorder %s95, %s96
    %p107 = scmp.eq.s32.totalorder %s14, 0
    %p108 = por %p106, %p107
    %p109 = scmp.ne.s32.totalorder %s95, %s96
    %p110 = scmp.eq.s32.totalorder %s15, 23
    %p111 = por %p109, %p110
    %p113 = scmp.ne.s32.totalorder %s96, %s112
    %p114 = scmp.eq.s32.totalorder %s15, 0
    %p115 = por %p113, %p114
    %s116 = ssub.s32 %s17, %s31
    %s117 = ssub.s32 %s16, %s35
    %s118 = sor.u32 %s116, %s117
    %s119 = ssub.s32 %s18, %s27
    %s120 = sor.u32 %s118, %s119
    %p121 = scmp.eq.s32.totalorder %s120, 0
    %s123 = sadd.s32 %s122, 1
    %s124 = scalar_select %p121, %s122, %s123
    %p127 = pneg %p121
    %p128 = scmp.eq.s32.totalorder %s9, 23
    %p129 = por %p127, %p128
    %p130 = scmp.ne.s32.totalorder %s122, %s125
    %p131 = scmp.eq.s32.totalorder %s9, 0
    %p132 = por %p130, %p131
    %p133 = scmp.ne.s32.totalorder %s122, %s125
    %p134 = scmp.eq.s32.totalorder %s14, 23
    %p135 = por %p133, %p134
    %p136 = scmp.ne.s32.totalorder %s125, %s126
    %p137 = scmp.eq.s32.totalorder %s14, 0
    %p138 = por %p136, %p137
    %p139 = scmp.ne.s32.totalorder %s125, %s126
    %p140 = scmp.eq.s32.totalorder %s15, 23
    %p141 = por %p139, %p140
    %p143 = scmp.ne.s32.totalorder %s126, %s142
    %p144 = scmp.eq.s32.totalorder %s15, 0
    %p145 = por %p143, %p144
    %p146 = scmp.le.s32.totalorder 1, %s9
    %p147 = scmp.lt.s32.totalorder %s9, 25
    %p148 = pnand %p146, %p147
    %p149 = pneg %p148
    // Predicated region
    $region9: #{tpu_custom_call.1} parent=5 // pred_check
      _
    $region10: #{tpu_custom_call.1} parent=5 // pred_check_branch
      %151 = sbr.rel (%p148) target = $region12
    $region11: #{tpu_custom_call.1} parent=5 // pred_region
      %s152 = ssub.s32 %s9, 1
    $region12: #{tpu_custom_call.1} parent=5 // pred_fallthru
      _
    %p153 = scmp.lt.s32.totalorder %s9, 24
    // Predicated region
    $region13: #{tpu_custom_call.1} parent=5 // pred_check
      %p154 = pneg %p153
    $region14: #{tpu_custom_call.1} parent=5 // pred_check_branch
      %156 = sbr.rel (%p154) target = $region16
    $region15: #{tpu_custom_call.1} parent=5 // pred_region
      // Predicated region
      $region17: #{tpu_custom_call.1} parent=15 // pred_check
        %p157 = pneg %p50
      $region18: #{tpu_custom_call.1} parent=15 // pred_check_branch
        %159 = sbr.rel (%p157) target = $region20
      $region19: #{tpu_custom_call.1} parent=15 // pred_region
        %s160 = smul.u32 2, %s18
        %p161 = scmp.lt.s32.totalorder %s17, 1
        %s162 = scalar_select %p161, %s17, 1
        %p163 = scmp.lt.s32.totalorder %s160, 1
        %s164 = scalar_select %p163, %s160, 1
        %s165 = smul.addr %s162, 2
        %s166 = sadd.s32 %s164, %s165
        %s167 = smul.addr %s166, 4
        %s168 = scalar_lea.vmem %s0, %s167
        %s169 = smul.u32 2, %s18
      $region20: #{tpu_custom_call.1} parent=15 // pred_fallthru
        _
      // Predicated region
      $region21: #{tpu_custom_call.1} parent=15 // pred_check
        %p170 = pneg %p76
      $region22: #{tpu_custom_call.1} parent=15 // pred_check_branch
        %172 = sbr.rel (%p170) target = $region24
      $region23: #{tpu_custom_call.1} parent=15 // pred_region
        %p173 = scmp.lt.s32.totalorder %s16, 11
        %s174 = scalar_select %p173, %s16, 11
        %s175 = smul.addr %s174, 4
        %s176 = smul.addr %s175, 4
        %s177 = scalar_lea.vmem %s1, %s176
      $region24: #{tpu_custom_call.1} parent=15 // pred_fallthru
        _
      // Predicated region
      $region25: #{tpu_custom_call.1} parent=15 // pred_check
        %p178 = pneg %p102
      $region26: #{tpu_custom_call.1} parent=15 // pred_check_branch
        %180 = sbr.rel (%p178) target = $region28
      $region27: #{tpu_custom_call.1} parent=15 // pred_region
        %p181 = scmp.lt.s32.totalorder %s16, 11
        %s182 = scalar_select %p181, %s16, 11
        %s183 = scalar_lea.vmem %s2, %s182
      $region28: #{tpu_custom_call.1} parent=15 // pred_fallthru
        _
    $region16: #{tpu_custom_call.1} parent=5 // pred_fallthru
      _
    %p184 = scmp.le.s32.totalorder 1, %s9
    %p185 = scmp.lt.s32.totalorder %s9, 25
    %p186 = pnand %p184, %p185
    %p187 = pneg %p186
    // Predicated region
    $region29: #{tpu_custom_call.1} parent=5 // pred_check
      _
    $region30: #{tpu_custom_call.1} parent=5 // pred_check_branch
      %189 = sbr.rel (%p186) target = $region32
    $region31: #{tpu_custom_call.1} parent=5 // pred_region
      %s190 = ssub.s32 %s9, 1
      %s191 = smul.u32 2, %s21
      %p192 = scmp.lt.s32.totalorder %s20, 1
      %s193 = scalar_select %p192, %s20, 1
      %p194 = scmp.lt.s32.totalorder %s191, 1
      %s195 = scalar_select %p194, %s191, 1
      %s196 = smul.addr %s193, 2
      %s197 = sadd.s32 %s195, %s196
      %s198 = smul.addr %s197, 4
      %s199 = scalar_lea.vmem %s0, %s198
      %p200 = pneg %p56
      %p201 = pneg %p53
      %p202 = scmp.lt.s32.totalorder %s19, 11
      %s203 = scalar_select %p202, %s19, 11
      %s204 = smul.addr %s203, 4
      %s205 = smul.addr %s204, 4
      %s206 = scalar_lea.vmem %s1, %s205
      %p207 = pneg %p82
      %p208 = pneg %p79
      %p209 = scmp.lt.s32.totalorder %s19, 11
      %s210 = scalar_select %p209, %s19, 11
      %s211 = scalar_lea.vmem %s2, %s210
      %p212 = pneg %p108
      %p213 = pneg %p105
      %p214 = pneg %p138
      %p215 = pneg %p135
      %s216 = smul.u32 2, %s21
      %p217 = scmp.lt.s32.totalorder %s20, 1
      %s218 = scalar_select %p217, %s20, 1
      %p219 = scmp.lt.s32.totalorder %s19, 11
      %s220 = scalar_select %p219, %s19, 11
      %p221 = scmp.lt.s32.totalorder %s216, 1
      %s222 = scalar_select %p221, %s216, 1
      %s223 = smul.addr %s220, 2
      %s224 = sadd.s32 %s222, %s223
      %s225 = smul.addr %s218, 24
      %s226 = sadd.s32 %s224, %s225
      %s227 = smul.addr %s226, 4
      %s228 = scalar_lea.vmem %s3, %s227
      %s229 = smul.u32 2, %s21
      %p230 = scmp.lt.s32.totalorder %s20, 1
      %s231 = scalar_select %p230, %s20, 1
      %p232 = scmp.lt.s32.totalorder %s229, 1
      %s233 = scalar_select %p232, %s229, 1
      %s234 = smul.addr %s231, 2
      %s235 = sadd.s32 %s233, %s234
      %s236 = smul.addr %s235, 4
      %s237 = scalar_lea.vmem %s0, %s236
      %s238 = smul.u32 2, %s21
      %p239 = scmp.lt.s32.totalorder %s19, 11
      %s240 = scalar_select %p239, %s19, 11
      %s241 = smul.addr %s240, 4
      %s242 = smul.addr %s241, 4
      %s243 = scalar_lea.vmem %s1, %s242
      %p244 = scmp.lt.s32.totalorder %s19, 11
      %s245 = scalar_select %p244, %s19, 11
      %s246 = scalar_lea.vmem %s2, %s245
      %s247 = smul.u32 2, %s21
      %p248 = scmp.lt.s32.totalorder %s20, 1
      %s249 = scalar_select %p248, %s20, 1
      %p250 = scmp.lt.s32.totalorder %s19, 11
      %s251 = scalar_select %p250, %s19, 11
      %p252 = scmp.lt.s32.totalorder %s247, 1
      %s253 = scalar_select %p252, %s247, 1
      %s254 = smul.addr %s251, 2
      %s255 = sadd.s32 %s253, %s254
      %s256 = smul.addr %s249, 24
      %s257 = sadd.s32 %s255, %s256
      %s258 = smul.addr %s257, 4
      %s259 = scalar_lea.vmem %s3, %s258
      %s260 = smul.u32 2, %s21
      %v262 = vld [vmem:[%s237] sm:$0xf]
      %v263 = vld [vmem:[%s237 + $0x4] sm:$0xf]
      %v264 = vld [vmem:[%s243] sm:$0xf]
      %v265 = vld [vmem:[%s243 + $0x4] sm:$0xf]
      %v266 = vld [vmem:[%s243 + $0x8] sm:$0xf]
      %v267 = vld [vmem:[%s243 + $0xc] sm:$0xf]
      %v268 = vld [vmem:[%s246] sm:$0x1]
      %v270 = vperm.slane %v268, 0
      %v274 = vunpack.c.l.b16 %v262
      %v275 = vunpack.c.l.b16 %v263
      %v276 = vpack.c.b16 %v275, %v274
      %v281 = vunpack.c.l.b16 %v264
      %v282 = vunpack.c.l.b16 %v265
      %v283 = vunpack.c.l.b16 %v266
      %v284 = vunpack.c.l.b16 %v267
      %v285 = vpack.c.b16 %v282, %v281
      %v286 = vpack.c.b16 %v284, %v283
      %vm289 = vcmask 261120
      %v291 = vsel %vm289, %v276, 0
      %293 = vmatpush.bf16.msra.mxu0 0
      %294 = vmatpush.bf16.msra.mxu0 0
      %295 = vmatpush.bf16.msra.mxu0 0
      %296 = vmatpush.bf16.msra.mxu0 0
      %297 = vmatpush.bf16.msra.mxu0 0
      %298 = vmatpush.bf16.msra.mxu0 0
      %299 = vmatpush.bf16.msra.mxu0 %v286
      %300 = vmatpush.bf16.msra.mxu0 %v285
      %301 = vmatmul.bf16.gmra.mxu0 %v291
      %v302 = vpop.f32.mrf.mxu0
      %v303 = vadd.f32 %v270, %v302
      %v304 = vpop.f32.mrf.mxu0
      %v305 = vadd.f32 %v270, %v304
      %306 = vdwg.mxu0
      %v307 = vpack.c.bf16 %v303, %v303
      %v308 = vpack.c.bf16 %v305, %v305
      %vm309 = vcmask 60416
      %310 = vst.msk [vmem:[%s259] sm:$0xf] %vm309, %v307
      %311 = vst.msk [vmem:[%s259 + $0x4] sm:$0xf] %vm309, %v308
      %s312 = smul.u32 2, %s21
      %p313 = scmp.lt.s32.totalorder %s20, 1
      %s314 = scalar_select %p313, %s20, 1
      %p315 = scmp.lt.s32.totalorder %s19, 11
      %s316 = scalar_select %p315, %s19, 11
      %p317 = scmp.lt.s32.totalorder %s312, 1
      %s318 = scalar_select %p317, %s312, 1
      %s319 = smul.addr %s316, 2
      %s320 = sadd.s32 %s318, %s319
      %s321 = smul.addr %s314, 24
      %s322 = sadd.s32 %s320, %s321
      %s323 = smul.addr %s322, 4
      %s324 = scalar_lea.vmem %s3, %s323
      // Predicated region
      $region33: #{tpu_custom_call.1} parent=31 // pred_check
        %p325 = pneg %p135
      $region34: #{tpu_custom_call.1} parent=31 // pred_check_branch
        %327 = sbr.rel (%p325) target = $region36
      $region35: #{tpu_custom_call.1} parent=31 // pred_region
        %s328 = smul.u32 2, %s21
      $region36: #{tpu_custom_call.1} parent=31 // pred_fallthru
        _
    $region32: #{tpu_custom_call.1} parent=5 // pred_fallthru
      _
    %p329 = scmp.le.s32.totalorder 2, %s9
    // Predicated region
    $region37: #{tpu_custom_call.1} parent=5 // pred_check
      %p330 = pneg %p329
    $region38: #{tpu_custom_call.1} parent=5 // pred_check_branch
      %332 = sbr.rel (%p330) target = $region40
    $region39: #{tpu_custom_call.1} parent=5 // pred_region
      %s333 = ssub.s32 %s9, 2
      // Predicated region
      $region41: #{tpu_custom_call.1} parent=39 // pred_check
        %p334 = pneg %p141
      $region42: #{tpu_custom_call.1} parent=39 // pred_check_branch
        %336 = sbr.rel (%p334) target = $region44
      $region43: #{tpu_custom_call.1} parent=39 // pred_region
        %s337 = smul.u32 2, %s24
        %p338 = scmp.lt.s32.totalorder %s23, 1
        %s339 = scalar_select %p338, %s23, 1
        %p340 = scmp.lt.s32.totalorder %s22, 11
        %s341 = scalar_select %p340, %s22, 11
        %p342 = scmp.lt.s32.totalorder %s337, 1
        %s343 = scalar_select %p342, %s337, 1
        %s344 = smul.addr %s341, 2
        %s345 = sadd.s32 %s343, %s344
        %s346 = smul.addr %s339, 24
        %s347 = sadd.s32 %s345, %s346
        %s348 = smul.addr %s347, 4
        %s349 = scalar_lea.vmem %s3, %s348
      $region44: #{tpu_custom_call.1} parent=39 // pred_fallthru
        _
    $region40: #{tpu_custom_call.1} parent=5 // pred_fallthru
      _
  $region6: #{tpu_custom_call.1} parent=0 // loop_footer
    %s13 = sadd.s32 1, %s9
  $region7: #{tpu_custom_call.1} parent=0 // loop_footer_branch
    %8 = sbr.rel target = $region3
  $region8: #{tpu_custom_call.1} parent=0 // loop_exit
    _

</llo_original>
